<compile_context>
chip_gen: v7x
topology: tpu7x:2x2x1
jax: 0.10.0
libtpu: 0.0.40
codegen_flags: <defaults>
</compile_context>

<pallas_src>
import jax
import jax.numpy as jnp
from jax.experimental import pallas as pl
from jax.experimental.pallas import tpu as pltpu

_MAX_SUBLANE_TILE = 8192  # batch rows per block (multiple of 8)


def _fixed_varier_kernel(params_ref, out_ref):
    # params_ref: (4,) in SMEM; out_ref: (TB, 4) in VMEM.
    # Build the tile with scalar splats selected by a lane-axis iota:
    # column j of every row is params[j]. Pure VPU (iota + cmp + select),
    # no cross-lane/XLU work and no VMEM input DMA.
    tb = out_ref.shape[0]
    col = jax.lax.broadcasted_iota(jnp.int32, (tb, 4), dimension=1)
    tile = jnp.where(
        col == 0, params_ref[0],
        jnp.where(col == 1, params_ref[1],
                  jnp.where(col == 2, params_ref[2], params_ref[3])))
    out_ref[...] = tile.astype(out_ref.dtype)


def fixed_varier_forward(x: jax.Array, params: jax.Array) -> jax.Array:
    """Equivalent of FixedVarier.forward: params (4,) expanded to (b, 4).

    Only x.shape[0] is used, matching the PyTorch module. Output dtype
    follows params.dtype (the module returns the parameter in its own dtype).
    """
    b = x.shape[0]

    # Single full-array block for small/moderate batches; 8192-row sublane
    # tiles (multiple of 8, lane dim == full array dim 4) for huge batches.
    tb = b if b <= _MAX_SUBLANE_TILE else _MAX_SUBLANE_TILE
    grid = (pl.cdiv(b, tb),)

    itemsize = jnp.dtype(params.dtype).itemsize
    return pl.pallas_call(
        _fixed_varier_kernel,
        out_shape=jax.ShapeDtypeStruct((b, 4), params.dtype),
        grid=grid,
        in_specs=[pl.BlockSpec(memory_space=pltpu.MemorySpace.SMEM)],
        out_specs=pl.BlockSpec((tb, 4), lambda i: (i, 0)),
        compiler_params=pltpu.CompilerParams(
            dimension_semantics=("parallel",),
        ),
        cost_estimate=pl.CostEstimate(
            flops=0, transcendentals=0, bytes_accessed=b * 4 * itemsize),
    )(params)


if __name__ == "__main__":
    key = jax.random.PRNGKey(0)
    k_params, k_x = jax.random.split(key)

    # Deterministic "learnable" params: [raw_omega, delta, raw_phi, raw_time]
    params = jax.random.normal(k_params, (4,), dtype=jnp.float32)

    # Small NCHW input; only its batch dim matters for the forward pass.
    x = jax.random.normal(k_x, (2, 4, 16, 16), dtype=jnp.float32)

    out = fixed_varier_forward(x, params)
    out = jax.block_until_ready(out)

    # Reference check against the pure-JAX equivalent of the PyTorch module.
    ref = jnp.broadcast_to(params[None, :], (x.shape[0], 4))
    assert out.shape == (x.shape[0], 4), out.shape
    assert out.dtype == params.dtype, out.dtype
    assert jnp.allclose(out, ref), "mismatch vs reference broadcast"

    print("KERNEL_OK")
</pallas_src>

<mosaic_0001>
module attributes {stable_mosaic.version = 11 : i64} {
  func.func @_fixed_varier_kernel(%arg0: i32, %arg1: memref<4xf32, #tpu.memory_space<smem>>, %arg2: memref<2x4xf32, #tpu.memory_space<vmem>>) attributes {dimension_semantics = [#tpu.dimension_semantics<parallel>], iteration_bounds = array<i64: 1>, scalar_prefetch = 0 : i64, scratch_operands = 0 : i64, tpu.core_type = #tpu.core_type<tc>, window_params = [{transform_indices = @transform_0, window_bounds = array<i64: 4>}, {transform_indices = @transform_1, window_bounds = array<i64: 2, 4>}]} {
    %0 = tpu.iota {dimensions = array<i32: 1>} : vector<2x4xi32>
    %c0_i32 = arith.constant 0 : i32
    %1 = vector.broadcast %c0_i32 : i32 to vector<2x4xi32>
    %2 = arith.cmpi eq, %0, %1 : vector<2x4xi32>
    %c0 = arith.constant 0 : index
    %3 = memref.load %arg1[%c0] : memref<4xf32, #tpu.memory_space<smem>>
    %c1_i32 = arith.constant 1 : i32
    %4 = vector.broadcast %c1_i32 : i32 to vector<2x4xi32>
    %5 = arith.cmpi eq, %0, %4 : vector<2x4xi32>
    %c1 = arith.constant 1 : index
    %6 = memref.load %arg1[%c1] : memref<4xf32, #tpu.memory_space<smem>>
    %c2_i32 = arith.constant 2 : i32
    %7 = vector.broadcast %c2_i32 : i32 to vector<2x4xi32>
    %8 = arith.cmpi eq, %0, %7 : vector<2x4xi32>
    %c2 = arith.constant 2 : index
    %9 = memref.load %arg1[%c2] : memref<4xf32, #tpu.memory_space<smem>>
    %c3 = arith.constant 3 : index
    %10 = memref.load %arg1[%c3] : memref<4xf32, #tpu.memory_space<smem>>
    %11 = vector.broadcast %9 : f32 to vector<2x4xf32>
    %12 = vector.broadcast %10 : f32 to vector<2x4xf32>
    %13 = arith.select %8, %11, %12 : vector<2x4xi1>, vector<2x4xf32>
    %14 = vector.broadcast %6 : f32 to vector<2x4xf32>
    %15 = arith.select %5, %14, %13 : vector<2x4xi1>, vector<2x4xf32>
    %16 = vector.broadcast %3 : f32 to vector<2x4xf32>
    %17 = arith.select %2, %16, %15 : vector<2x4xi1>, vector<2x4xf32>
    %c0_0 = arith.constant 0 : index
    %c0_1 = arith.constant 0 : index
    %18 = vector.load %arg2[%c0_0, %c0_1] : memref<2x4xf32, #tpu.memory_space<vmem>>, vector<2x4xf32>
    tpu.vector_store %arg2[%c0_0, %c0_1], %17 {strides = array<i32>} : memref<2x4xf32, #tpu.memory_space<vmem>>, vector<2x4xf32>,
    return
  }
  func.func @transform_0(%arg0: i32) -> i32 {
    %c0_i32 = arith.constant 0 : i32
    %c0_i32_0 = arith.constant 0 : i32
    return %c0_i32 : i32
  }
  func.func @transform_1(%arg0: i32) -> (i32, i32) {
    %c0_i32 = arith.constant 0 : i32
    %c0_i32_0 = arith.constant 0 : i32
    return %arg0, %c0_i32 : i32, i32
  }
}

</mosaic_0001>

<llo_original>
// kernel: tpu_custom_call.1
$region0: #{tpu_custom_call.1}
  #allocation0 [shape = 'u32[]', space=smem, size = 0x4, offset = 0x4, fixed_abs, tag = 'smem constant byte address 0x4 - core index']
  #allocation1 [shape = 'u32[144,128]{1,0:T(1,128)}', space=vmem, size = 0x12000, scoped, tag = 'internal scratch']
  %s0 = inlined_call_operand.hbm [shape: f32[4], index: 0, kind: input, shape index: {}]
  %s1 = inlined_call_operand.hbm [shape: f32[2,4], index: 1, kind: output, shape index: {}]
  %s2 = sld [smem:[#allocation0]]
  $region18: #{tpu_custom_call.1} parent=0
    _
  %s4 = ssub.s32 1, %s2
  %s5 = scalar_select 0, %s4, %s2
  $region1: #{tpu_custom_call.1} parent=0
    #allocation2 [shape = 'u8[512]{0}', space=smem, size = 0x200, scoped, tag = 'input window, operand 0, single buffered']
    #allocation3 [shape = 's32[1]{0}', space=sflag, size = 0x4, scoped, tag = 'scoped memory for tpu_custom_call.1']
    #allocation4 [shape = 's32[1]{0}', space=sflag, size = 0x4, scoped, tag = 'scoped memory for tpu_custom_call.1']
    #allocation5 [shape = 'u8[1024]{0}', space=vmem, size = 0x400, scoped, tag = 'output window, operand 0, single buffered']
    %6 = vsyncpa [#allocation4], 0
    %7 = vsyncpa [#allocation3], 0
    // Predicated region
    $region2: #{tpu_custom_call.1} parent=1 // pred_check
      _
    $region3: #{tpu_custom_call.1} parent=1 // pred_check_branch
      %9 = sbr.rel (0) target = $region5
    $region4: #{tpu_custom_call.1} parent=1 // pred_region
      %s11 = ssub.s32 16, 16
      %12 = vsyncadd [#allocation4], %s11
      %15 = dma.hbm_to_smem %s0, 16, [#allocation2], [#allocation4]
    $region5: #{tpu_custom_call.1} parent=1 // pred_fallthru
      _
    // Predicated region
    $region6: #{tpu_custom_call.1} parent=1 // pred_check
      _
    $region7: #{tpu_custom_call.1} parent=1 // pred_check_branch
      %17 = sbr.rel (0) target = $region9
    $region8: #{tpu_custom_call.1} parent=1 // pred_region
      %18 = dma.done [#allocation4], 16
    $region9: #{tpu_custom_call.1} parent=1 // pred_fallthru
      _
    %19 = sfence
    %v20 = vlaneseq
    %v21 = vand.u32 %v20, 127
    %vm22 = vcmp.eq.s32.totalorder %v21, 0
    %s23 = sld [smem:[#allocation2]]
    %vm24 = vcmp.eq.s32.totalorder %v21, 1
    %s25 = sld [smem:[#allocation2 + $0x1]]
    %vm26 = vcmp.eq.s32.totalorder %v21, 2
    %s27 = sld [smem:[#allocation2 + $0x2]]
    %s28 = sld [smem:[#allocation2 + $0x3]]
    %v29 = vstv %s27
    %v30 = vstv %s28
    %v31 = vsel %vm26, %v29, %v30
    %v32 = vstv %s25
    %v33 = vsel %vm24, %v32, %v31
    %v34 = vstv %s23
    %v35 = vsel %vm22, %v34, %v33
    %vm36 = vcmask 25600
    %37 = vst.msk [vmem:[#allocation5] sm:$0x3] %vm36, %v35
    // Predicated region
    $region10: #{tpu_custom_call.1} parent=1 // pred_check
      _
    $region11: #{tpu_custom_call.1} parent=1 // pred_check_branch
      %39 = sbr.rel (0) target = $region13
    $region12: #{tpu_custom_call.1} parent=1 // pred_region
      %s41 = ssub.s32 32, 32
      %42 = vsyncadd [#allocation3], %s41
      %s44 = sshll.u32 [#allocation5], 4
      %s45 = int_to_ptr.vmem [resolvable:$true] %s44
      %47 = dma.vmem_to_hbm [thread:$0]  %s45, 32, %s1, [#allocation3]
    $region13: #{tpu_custom_call.1} parent=1 // pred_fallthru
      _
    // Predicated region
    $region14: #{tpu_custom_call.1} parent=1 // pred_check
      _
    $region15: #{tpu_custom_call.1} parent=1 // pred_check_branch
      %49 = sbr.rel (0) target = $region17
    $region16: #{tpu_custom_call.1} parent=1 // pred_region
      %50 = dma.done [#allocation3], 32
    $region17: #{tpu_custom_call.1} parent=1 // pred_fallthru
      _
    %51 = vsyncpa [#allocation3], 1
    %52 = vsyncpa [#allocation4], 1

</llo_original>
